<compile_context>
chip_gen: v5e
topology: v5e:2x2
jax: 0.10.0
libtpu: 0.0.40
codegen_flags: <defaults>
</compile_context>

<pallas_src>
import functools

import jax
import jax.numpy as jnp
from jax.experimental import pallas as pl
from jax.experimental.pallas import tpu as pltpu


# -----------------------------------------------------------------------------
# Shared attention tail (scores -> softmax -> rank-1 output -> out_proj)
# -----------------------------------------------------------------------------
def _attention_core(q, k, vsum, mask_ref, bd, hsel, wo, bo, out_ref, scores_ref,
                    *, bt, seq, kv_len, num_heads, head_dim):
    """q: (Bt*S, E) pre-scaled; k: (Bt*Skv, E); vsum: (Bt*Skv, H) per-head
    d-sum of V; mask_ref block (Bt, S, Skv) additive (or None).
    bd: (E, E) block-diagonal ones (same-head indicator), hsel: (H, E)."""
    H, Dh, S, Skv = num_heads, head_dim, seq, kv_len
    E = H * Dh
    HS = H * Skv                       # == E (module's .view() needs Skv == Dh)
    R = bt * S                         # query rows handled this grid step

    # ---- scores: ONE batched MXU pass against a block-diagonal key operand.
    # kbd[bi, e, h*Skv+k] = k[bi, k, e] if head(e)==h else 0, so q3 @ kbd is
    # the per-head q·kᵀ with heads packed along the lane axis (lane-dense).
    q3 = q.reshape(bt, S, E)
    kT = jnp.swapaxes(k.reshape(bt, Skv, E), 1, 2)              # (bt, E, Skv)
    kbd = jnp.concatenate([kT] * H, axis=2) * bd[None]          # (bt, E, HS)
    scores = jnp.einsum("bqe,bej->bqj", q3, kbd,
                        preferred_element_type=jnp.float32)     # (bt, S, HS)
    scores = scores.reshape(R, HS)

    if mask_ref is not None:
        m2 = mask_ref[...].reshape(R, Skv)
        scores = scores + jnp.concatenate([m2] * H, axis=1)     # bcast over heads

    # ---- per-head softmax, staying in the lane-packed (R, H*Skv) layout.
    # A row-global max is a valid stabiliser (softmax is shift-invariant to any
    # per-row constant), avoiding a segmented per-head lane max.
    m_row = jnp.max(scores, axis=-1, keepdims=True)             # (R, 1)
    e = jnp.exp(scores - m_row)
    # Per-head denominators, broadcast back to every lane of the head, in one
    # MXU pass against the block-of-ones matrix.
    denom = jnp.dot(e, bd, preferred_element_type=jnp.float32)  # (R, HS)
    attn = e * (1.0 / denom)   # exact recip keeps ~1e-5 parity with reference;
                               # use pl.reciprocal(denom, approx=True) for bf16.
    # TODO(synk): nn.Dropout(attention_dropout) — identity here (eval / p=0).
    scores_ref[...] = attn.reshape(bt, S, HS)     # lane-dense; wrapper unpacks

    # ---- einsum('bnqk,bnvd->bnqv') == per-head rank-1 outer product:
    #   out_h[q, v] = (sum_k attn_h[q, k]) * (sum_d value_h[v, d]).
    # Per-head row-sum broadcast over the head's Dh output lanes (one matmul):
    row_bcast = jnp.dot(attn, bd, preferred_element_type=jnp.float32)   # (R, E)
    # Per-head d-sums of V rearranged to lane order [head-major, kv-pos-minor]:
    vsumT = jnp.swapaxes(vsum.reshape(bt, Skv, H), 1, 2)        # (bt, H, Skv)
    vflat = jnp.sum(jnp.concatenate([vsumT] * H, axis=2) * hsel[None],
                    axis=1, keepdims=True)                      # (bt, 1, E)
    vexp = jnp.broadcast_to(vflat, (bt, S, E)).reshape(R, E)
    concat = row_bcast * vexp   # == attn_output.transpose(1,2).view(b, s, E)

    # out_proj on the tall lane-dense (R, E) slab.
    out = jnp.dot(concat, wo, preferred_element_type=jnp.float32) + bo
    out_ref[...] = out.reshape(bt, S, E)


# -----------------------------------------------------------------------------
# Kernels: Bt batch elements per grid step.
# -----------------------------------------------------------------------------
def _self_attn_kernel(*refs, bt, seq, num_heads, head_dim, embed_dim, has_mask):
    if has_mask:
        (h_ref, mask_ref, bd_ref, hsel_ref, w_all_ref, b_all_ref,
         wo_ref, bo_ref, out_ref, scores_ref) = refs
    else:
        (h_ref, bd_ref, hsel_ref, w_all_ref, b_all_ref,
         wo_ref, bo_ref, out_ref, scores_ref) = refs
        mask_ref = None
    E = embed_dim
    x = h_ref[...].reshape(bt * seq, E)                   # tall (Bt*S, E) LHS
    # Fused Q | K | V-sum projection: one MXU matmul -> (Bt*S, 2E + H).
    proj = (jnp.dot(x, w_all_ref[...], preferred_element_type=jnp.float32)
            + b_all_ref[...])
    _attention_core(proj[:, :E], proj[:, E:2 * E], proj[:, 2 * E:],
                    mask_ref, bd_ref[...], hsel_ref[...],
                    wo_ref[...], bo_ref[...], out_ref, scores_ref,
                    bt=bt, seq=seq, kv_len=seq,
                    num_heads=num_heads, head_dim=head_dim)


def _cross_attn_kernel(*refs, bt, seq, kv_len, num_heads, head_dim, embed_dim,
                       has_mask):
    if has_mask:
        (h_ref, kv_ref, mask_ref, bd_ref, hsel_ref, wq_ref, bq_ref,
         wkv_ref, bkv_ref, wo_ref, bo_ref, out_ref, scores_ref) = refs
    else:
        (h_ref, kv_ref, bd_ref, hsel_ref, wq_ref, bq_ref,
         wkv_ref, bkv_ref, wo_ref, bo_ref, out_ref, scores_ref) = refs
        mask_ref = None
    E = embed_dim
    x = h_ref[...].reshape(bt * seq, E)
    kvx = kv_ref[...].reshape(bt * kv_len, E)
    q = (jnp.dot(x, wq_ref[...], preferred_element_type=jnp.float32)
         + bq_ref[...])                                   # scaling folded in
    kvp = (jnp.dot(kvx, wkv_ref[...], preferred_element_type=jnp.float32)
           + bkv_ref[...])                                # fused K | V-sum
    _attention_core(q, kvp[:, :E], kvp[:, E:],
                    mask_ref, bd_ref[...], hsel_ref[...],
                    wo_ref[...], bo_ref[...], out_ref, scores_ref,
                    bt=bt, seq=seq, kv_len=kv_len,
                    num_heads=num_heads, head_dim=head_dim)


# -----------------------------------------------------------------------------
# Wrapper
# -----------------------------------------------------------------------------
def _pick_batch_tile(batch, seq, target_rows=256):
    """Largest divisor Bt of `batch` with Bt*seq <= target_rows while keeping
    >= 2 grid steps (v7x has two TensorCores; don't collapse to one step)."""
    bt = 1
    for cand in range(1, batch + 1):
        if batch % cand == 0 and batch // cand >= 2 and cand * seq <= target_rows:
            bt = cand
    return bt


def marian_attention_pallas(hidden, mask, params, num_heads,
                            key_value_states=None, batch_tile=None):
    B, S, E = hidden.shape
    H = num_heads
    Dh = E // H
    scaling = Dh ** (-0.5)

    self_attn = key_value_states is None
    kv = hidden if self_attn else key_value_states
    Skv = kv.shape[1]
    # The module's .view() after 'bnqk,bnvd->bnqv' requires kv_len == head_dim.
    assert Skv == Dh and H * Dh == E, "MarianAttention requires kv_len == head_dim"

    has_mask = mask is not None
    if has_mask:
        assert mask.shape == (B, 1, S, Skv)
        mask2 = mask.reshape(B, S, Skv).astype(jnp.float32)   # squeeze head dim

    Bt = _pick_batch_tile(B, S) if batch_tile is None else batch_tile
    assert B % Bt == 0
    grid = (B // Bt,)

    # ---- one-time parameter prep (wrapper-side) -----------------------------
    # PyTorch Linear stores W as (out, in); pre-transpose so kernels do x @ W.
    # Fold the query scaling and the per-head d-sum of the V projection into
    # the weights (exact linear algebra).
    head_of = jnp.arange(E) // Dh
    P = (head_of[:, None] == jnp.arange(H)[None, :]).astype(jnp.float32)  # (E,H)
    wq_t = params["wq"].T * scaling                       # (E, E)
    bq = (params["bq"] * scaling).reshape(1, E)
    wk_t = params["wk"].T                                 # (E, E)
    bk = params["bk"].reshape(1, E)
    wv_sum = params["wv"].T @ P                           # (E, H)
    bv_sum = (params["bv"] @ P).reshape(1, H)
    wo_t = params["wo"].T                                 # (E, E)
    bo = params["bo"].reshape(1, E)
    # Constants for the lane-packed path: block-diagonal same-head indicator
    # and head selector (fetched once — constant block indices).
    bd = (head_of[:, None] == head_of[None, :]).astype(jnp.float32)        # (E,E)
    hsel = (jnp.arange(H)[:, None] == head_of[None, :]).astype(jnp.float32)  # (H,E)

    HS = H * Skv
    out_shape = (
        jax.ShapeDtypeStruct((B, S, E), jnp.float32),
        jax.ShapeDtypeStruct((B, S, HS), jnp.float32),    # lane-dense scores
    )
    out_specs = [
        pl.BlockSpec((Bt, S, E), lambda b: (b, 0, 0)),
        pl.BlockSpec((Bt, S, HS), lambda b: (b, 0, 0)),
    ]

    def const2d(shape):
        return pl.BlockSpec(shape, lambda b: (0, 0))

    compiler_params = pltpu.CompilerParams(
        dimension_semantics=("parallel",),                # 1 block per TC (v7x)
    )

    if self_attn:
        # Fully fused projection weight: [ Wq^T*s | Wk^T | Wv^T@P ] -> (E, 2E+H)
        w_all = jnp.concatenate([wq_t, wk_t, wv_sum], axis=1)
        b_all = jnp.concatenate([bq, bk, bv_sum], axis=1)
        kernel = functools.partial(
            _self_attn_kernel, bt=Bt, seq=S, num_heads=H, head_dim=Dh,
            embed_dim=E, has_mask=has_mask)
        in_specs = [pl.BlockSpec((Bt, S, E), lambda b: (b, 0, 0))]
        args = [hidden]
        if has_mask:
            in_specs.append(pl.BlockSpec((Bt, S, Skv), lambda b: (b, 0, 0)))
            args.append(mask2)
        in_specs += [const2d((E, E)), const2d((H, E)),
                     const2d((E, 2 * E + H)), const2d((1, 2 * E + H)),
                     const2d((E, E)), const2d((1, E))]
        args += [bd, hsel, w_all, b_all, wo_t, bo]
    else:
        wkv = jnp.concatenate([wk_t, wv_sum], axis=1)     # (E, E+H)
        bkv = jnp.concatenate([bk, bv_sum], axis=1)       # (1, E+H)
        kernel = functools.partial(
            _cross_attn_kernel, bt=Bt, seq=S, kv_len=Skv, num_heads=H,
            head_dim=Dh, embed_dim=E, has_mask=has_mask)
        in_specs = [pl.BlockSpec((Bt, S, E), lambda b: (b, 0, 0)),
                    pl.BlockSpec((Bt, Skv, E), lambda b: (b, 0, 0))]
        args = [hidden, kv]
        if has_mask:
            in_specs.append(pl.BlockSpec((Bt, S, Skv), lambda b: (b, 0, 0)))
            args.append(mask2)
        in_specs += [const2d((E, E)), const2d((H, E)),
                     const2d((E, E)), const2d((1, E)),
                     const2d((E, E + H)), const2d((1, E + H)),
                     const2d((E, E)), const2d((1, E))]
        args += [bd, hsel, wq_t, bq, wkv, bkv, wo_t, bo]

    out, scores_packed = pl.pallas_call(
        kernel,
        out_shape=out_shape,
        grid_spec=pltpu.PrefetchScalarGridSpec(
            num_scalar_prefetch=0,
            grid=grid,
            in_specs=in_specs,
            out_specs=out_specs),
        compiler_params=compiler_params,
    )(*args)

    # Unpack the lane-dense scores to the module's (B, H, S, Skv) layout.
    scores = scores_packed.reshape(B, S, H, Skv).transpose(0, 2, 1, 3)
    return out, scores


# -----------------------------------------------------------------------------
# Pure-JAX reference (mirrors the PyTorch forward exactly)
# -----------------------------------------------------------------------------
def marian_attention_ref(hidden, kv, mask, params, num_heads):
    B, S, E = hidden.shape
    Skv = kv.shape[1]
    head_dim = E // num_heads
    scaling = head_dim ** (-0.5)

    def lin(x, w, b):  # w: (out, in)
        return jnp.einsum("bse,fe->bsf", x, w) + b

    q = lin(hidden, params["wq"], params["bq"]) * scaling
    k = lin(kv, params["wk"], params["bk"])
    v = lin(kv, params["wv"], params["bv"])

    def shape(t, L):
        return t.reshape(B, L, num_heads, head_dim).transpose(0, 2, 1, 3)

    q, k, v = shape(q, S), shape(k, Skv), shape(v, Skv)

    attn_weights = jnp.einsum("bnqd,bnkd->bnqk", q, k)
    if mask is not None:
        attn_weights = attn_weights + mask
    attn_scores = jax.nn.softmax(attn_weights, axis=-1)
    # Exact reproduction of the module's einsum (k and d summed independently):
    attn_output = jnp.einsum("bnqk,bnvd->bnqv", attn_scores, v)
    attn_output = attn_output.transpose(0, 2, 1, 3).reshape(B, S, E)
    out = jnp.einsum("bse,fe->bsf", attn_output, params["wo"]) + params["bo"]
    return out, attn_scores


# -----------------------------------------------------------------------------
# Main
# -----------------------------------------------------------------------------
if __name__ == "__main__":
    # d_model=32, heads=4, head_dim=8; seq_len=8 (== head_dim, required by the
    # module's .view() after the 'bnqk,bnvd->bnqv' einsum).
    B, S, E, H = 2, 8, 32, 4
    Dh = E // H

    key = jax.random.PRNGKey(0)
    keys = jax.random.split(key, 14)

    hidden = jax.random.normal(keys[0], (B, S, E), dtype=jnp.float32)
    mask = 0.1 * jax.random.normal(keys[1], (B, 1, S, S), dtype=jnp.float32)

    def init_w(k, shape):
        return 0.05 * jax.random.normal(k, shape, dtype=jnp.float32)

    params = {
        "wq": init_w(keys[2], (E, E)), "bq": init_w(keys[3], (E,)),
        "wk": init_w(keys[4], (E, E)), "bk": init_w(keys[5], (E,)),
        "wv": init_w(keys[6], (E, E)), "bv": init_w(keys[7], (E,)),
        "wo": init_w(keys[8], (E, E)), "bo": init_w(keys[9], (E,)),
    }

    # Tolerance allows FP reassociation from the wrapper-side weight fusion and
    # the matmul-based softmax reductions (exact algebra, different order).
    ATOL = RTOL = 3e-5

    # --- self-attention, B=2 (Bt=1, 2 grid steps) ----------------------------
    out, scores = marian_attention_pallas(hidden, mask, params, H)
    out = jax.block_until_ready(out)
    scores = jax.block_until_ready(scores)
    ref_out, ref_scores = marian_attention_ref(hidden, hidden, mask, params, H)
    assert out.shape == (B, S, E)
    assert scores.shape == (B, H, S, S)
    assert jnp.allclose(out, ref_out, atol=ATOL, rtol=RTOL), "self-attn output mismatch"
    assert jnp.allclose(scores, ref_scores, atol=ATOL, rtol=RTOL), "self-attn scores mismatch"

    # --- cross-attention (kv_len must equal head_dim for the module's view) --
    kv = jax.random.normal(keys[10], (B, Dh, E), dtype=jnp.float32)
    mask_x = 0.1 * jax.random.normal(keys[11], (B, 1, S, Dh), dtype=jnp.float32)
    out_x, scores_x = marian_attention_pallas(hidden, mask_x, params, H,
                                              key_value_states=kv)
    out_x = jax.block_until_ready(out_x)
    scores_x = jax.block_until_ready(scores_x)
    ref_out_x, ref_scores_x = marian_attention_ref(hidden, kv, mask_x, params, H)
    assert jnp.allclose(out_x, ref_out_x, atol=ATOL, rtol=RTOL), "cross-attn output mismatch"
    assert jnp.allclose(scores_x, ref_scores_x, atol=ATOL, rtol=RTOL), "cross-attn scores mismatch"

    # --- self-attention, B=8, no mask: exercises the Bt>1 row-batching path
    # (Bt=4 -> 32-row MXU slabs, grid of 2) and the mask-free kernel variant.
    hidden8 = jax.random.normal(keys[12], (8, S, E), dtype=jnp.float32)
    out8, scores8 = marian_attention_pallas(hidden8, None, params, H)
    out8 = jax.block_until_ready(out8)
    scores8 = jax.block_until_ready(scores8)
    ref_out8, ref_scores8 = marian_attention_ref(hidden8, hidden8, None, params, H)
    assert jnp.allclose(out8, ref_out8, atol=ATOL, rtol=RTOL), "batched self-attn output mismatch"
    assert jnp.allclose(scores8, ref_scores8, atol=ATOL, rtol=RTOL), "batched self-attn scores mismatch"

    print("KERNEL_OK")
</pallas_src>

<mosaic_0001>
module attributes {stable_mosaic.version = 11 : i64} {
  func.func @_self_attn_kernel(%arg0: i32, %arg1: memref<1x8x32xf32, #tpu.memory_space<vmem>>, %arg2: memref<1x8x8xf32, #tpu.memory_space<vmem>>, %arg3: memref<32x32xf32, #tpu.memory_space<vmem>>, %arg4: memref<4x32xf32, #tpu.memory_space<vmem>>, %arg5: memref<32x68xf32, #tpu.memory_space<vmem>>, %arg6: memref<1x68xf32, #tpu.memory_space<vmem>>, %arg7: memref<32x32xf32, #tpu.memory_space<vmem>>, %arg8: memref<1x32xf32, #tpu.memory_space<vmem>>, %arg9: memref<1x8x32xf32, #tpu.memory_space<vmem>>, %arg10: memref<1x8x32xf32, #tpu.memory_space<vmem>>) attributes {dimension_semantics = [#tpu.dimension_semantics<parallel>], iteration_bounds = array<i64: 2>, scalar_prefetch = 0 : i64, scratch_operands = 0 : i64, tpu.core_type = #tpu.core_type<tc>, window_params = [{transform_indices = @transform_0, window_bounds = array<i64: 1, 8, 32>}, {transform_indices = @transform_1, window_bounds = array<i64: 1, 8, 8>}, {pipeline_mode = #tpu.pipeline_mode<synchronous>, transform_indices = @transform_2, window_bounds = array<i64: 32, 32>}, {pipeline_mode = #tpu.pipeline_mode<synchronous>, transform_indices = @transform_3, window_bounds = array<i64: 4, 32>}, {pipeline_mode = #tpu.pipeline_mode<synchronous>, transform_indices = @transform_4, window_bounds = array<i64: 32, 68>}, {pipeline_mode = #tpu.pipeline_mode<synchronous>, transform_indices = @transform_5, window_bounds = array<i64: 1, 68>}, {pipeline_mode = #tpu.pipeline_mode<synchronous>, transform_indices = @transform_6, window_bounds = array<i64: 32, 32>}, {pipeline_mode = #tpu.pipeline_mode<synchronous>, transform_indices = @transform_7, window_bounds = array<i64: 1, 32>}, {transform_indices = @transform_8, window_bounds = array<i64: 1, 8, 32>}, {transform_indices = @transform_9, window_bounds = array<i64: 1, 8, 32>}]} {
    %c0 = arith.constant 0 : index
    %c0_0 = arith.constant 0 : index
    %c0_1 = arith.constant 0 : index
    %0 = vector.load %arg1[%c0, %c0_0, %c0_1] : memref<1x8x32xf32, #tpu.memory_space<vmem>>, vector<1x8x32xf32>
    %1 = vector.shape_cast %0 : vector<1x8x32xf32> to vector<8x32xf32>
    %c0_2 = arith.constant 0 : index
    %c0_3 = arith.constant 0 : index
    %2 = vector.load %arg5[%c0_2, %c0_3] : memref<32x68xf32, #tpu.memory_space<vmem>>, vector<32x68xf32>
    %cst = arith.constant dense<0.000000e+00> : vector<8x68xf32>
    %3 = tpu.matmul %1, %2, %cst {dimension_numbers = #tpu.dot_dimension_numbers<[1], [0], [0], [1], [0, 0, 1, 1], [], []>} : vector<8x32xf32>, vector<32x68xf32>, vector<8x68xf32> -> vector<8x68xf32>
    %c0_4 = arith.constant 0 : index
    %c0_5 = arith.constant 0 : index
    %4 = vector.load %arg6[%c0_4, %c0_5] : memref<1x68xf32, #tpu.memory_space<vmem>>, vector<1x68xf32>
    %5 = vector.broadcast %4 : vector<1x68xf32> to vector<8x68xf32>
    %6 = arith.addf %3, %5 : vector<8x68xf32>
    %7 = vector.extract_strided_slice %6 {offsets = [0, 0], sizes = [8, 32], strides = [1, 1]} : vector<8x68xf32> to vector<8x32xf32>
    %8 = vector.extract_strided_slice %6 {offsets = [0, 32], sizes = [8, 32], strides = [1, 1]} : vector<8x68xf32> to vector<8x32xf32>
    %9 = vector.extract_strided_slice %6 {offsets = [0, 64], sizes = [8, 4], strides = [1, 1]} : vector<8x68xf32> to vector<8x4xf32>
    %c0_6 = arith.constant 0 : index
    %c0_7 = arith.constant 0 : index
    %10 = vector.load %arg3[%c0_6, %c0_7] : memref<32x32xf32, #tpu.memory_space<vmem>>, vector<32x32xf32>
    %c0_8 = arith.constant 0 : index
    %c0_9 = arith.constant 0 : index
    %11 = vector.load %arg4[%c0_8, %c0_9] : memref<4x32xf32, #tpu.memory_space<vmem>>, vector<4x32xf32>
    %c0_10 = arith.constant 0 : index
    %c0_11 = arith.constant 0 : index
    %12 = vector.load %arg7[%c0_10, %c0_11] : memref<32x32xf32, #tpu.memory_space<vmem>>, vector<32x32xf32>
    %c0_12 = arith.constant 0 : index
    %c0_13 = arith.constant 0 : index
    %13 = vector.load %arg8[%c0_12, %c0_13] : memref<1x32xf32, #tpu.memory_space<vmem>>, vector<1x32xf32>
    %14 = vector.shape_cast %7 : vector<8x32xf32> to vector<1x8x32xf32>
    %15 = vector.shape_cast %8 : vector<8x32xf32> to vector<1x8x32xf32>
    %16 = tpu.transpose %15, [0, 2, 1] : vector<1x8x32xf32> -> vector<1x32x8xf32>
    %17 = tpu.concatenate %16, %16, %16, %16 in 2 : vector<1x32x8xf32>, vector<1x32x8xf32>, vector<1x32x8xf32>, vector<1x32x8xf32> -> vector<1x32x32xf32>
    %18 = vector.shape_cast %10 : vector<32x32xf32> to vector<1x32x32xf32>
    %19 = arith.mulf %17, %18 : vector<1x32x32xf32>
    "tpu.trace_start"() <{level = 10 : i32, message = "bqe,bej->bqj"}> : () -> ()
    %cst_14 = arith.constant dense<0.000000e+00> : vector<1x8x32xf32>
    %20 = tpu.matmul %14, %19, %cst_14 {dimension_numbers = #tpu.dot_dimension_numbers<[2], [1], [1], [2], [0, 0, 0, 1, 1, 2], [0], [0]>} : vector<1x8x32xf32>, vector<1x32x32xf32>, vector<1x8x32xf32> -> vector<1x8x32xf32>
    "tpu.trace_stop"() : () -> ()
    %21 = vector.shape_cast %20 : vector<1x8x32xf32> to vector<8x32xf32>
    %c0_15 = arith.constant 0 : index
    %c0_16 = arith.constant 0 : index
    %c0_17 = arith.constant 0 : index
    %22 = vector.load %arg2[%c0_15, %c0_16, %c0_17] : memref<1x8x8xf32, #tpu.memory_space<vmem>>, vector<1x8x8xf32>
    %23 = vector.shape_cast %22 : vector<1x8x8xf32> to vector<8x8xf32>
    %24 = tpu.concatenate %23, %23, %23, %23 in 1 : vector<8x8xf32>, vector<8x8xf32>, vector<8x8xf32>, vector<8x8xf32> -> vector<8x32xf32>
    %25 = arith.addf %21, %24 : vector<8x32xf32>
    %cst_18 = arith.constant dense<0xFF800000> : vector<8xf32>
    %26 = vector.multi_reduction <maximumf>, %25, %cst_18 [1] : vector<8x32xf32> to vector<8xf32>
    %27 = vector.shape_cast %26 : vector<8xf32> to vector<8x1xf32>
    %28 = vector.broadcast %27 : vector<8x1xf32> to vector<8x32xf32>
    %29 = arith.subf %25, %28 : vector<8x32xf32>
    %30 = math.exp %29 : vector<8x32xf32>
    %cst_19 = arith.constant dense<0.000000e+00> : vector<8x32xf32>
    %31 = tpu.matmul %30, %10, %cst_19 {dimension_numbers = #tpu.dot_dimension_numbers<[1], [0], [0], [1], [0, 0, 1, 1], [], []>} : vector<8x32xf32>, vector<32x32xf32>, vector<8x32xf32> -> vector<8x32xf32>
    %cst_20 = arith.constant 1.000000e+00 : f32
    %32 = vector.broadcast %cst_20 : f32 to vector<8x32xf32>
    %33 = arith.divf %32, %31 : vector<8x32xf32>
    %34 = arith.mulf %30, %33 : vector<8x32xf32>
    %35 = vector.shape_cast %34 : vector<8x32xf32> to vector<1x8x32xf32>
    %c0_21 = arith.constant 0 : index
    %c0_22 = arith.constant 0 : index
    %c0_23 = arith.constant 0 : index
    %36 = vector.load %arg10[%c0_21, %c0_22, %c0_23] : memref<1x8x32xf32, #tpu.memory_space<vmem>>, vector<1x8x32xf32>
    tpu.vector_store %arg10[%c0_21, %c0_22, %c0_23], %35 {strides = array<i32>} : memref<1x8x32xf32, #tpu.memory_space<vmem>>, vector<1x8x32xf32>,
    %cst_24 = arith.constant dense<0.000000e+00> : vector<8x32xf32>
    %37 = tpu.matmul %34, %10, %cst_24 {dimension_numbers = #tpu.dot_dimension_numbers<[1], [0], [0], [1], [0, 0, 1, 1], [], []>} : vector<8x32xf32>, vector<32x32xf32>, vector<8x32xf32> -> vector<8x32xf32>
    %38 = vector.shape_cast %9 : vector<8x4xf32> to vector<1x8x4xf32>
    %39 = tpu.transpose %38, [0, 2, 1] : vector<1x8x4xf32> -> vector<1x4x8xf32>
    %40 = tpu.concatenate %39, %39, %39, %39 in 2 : vector<1x4x8xf32>, vector<1x4x8xf32>, vector<1x4x8xf32>, vector<1x4x8xf32> -> vector<1x4x32xf32>
    %41 = vector.shape_cast %11 : vector<4x32xf32> to vector<1x4x32xf32>
    %42 = arith.mulf %40, %41 : vector<1x4x32xf32>
    %cst_25 = arith.constant dense<0.000000e+00> : vector<1x32xf32>
    %43 = vector.multi_reduction <add>, %42, %cst_25 [1] : vector<1x4x32xf32> to vector<1x32xf32>
    %44 = vector.shape_cast %43 : vector<1x32xf32> to vector<1x1x32xf32>
    %45 = vector.shape_cast %44 : vector<1x1x32xf32> to vector<1x1x32xf32>
    %46 = vector.broadcast %45 : vector<1x1x32xf32> to vector<1x8x32xf32>
    %47 = vector.shape_cast %46 : vector<1x8x32xf32> to vector<8x32xf32>
    %48 = arith.mulf %37, %47 : vector<8x32xf32>
    %cst_26 = arith.constant dense<0.000000e+00> : vector<8x32xf32>
    %49 = tpu.matmul %48, %12, %cst_26 {dimension_numbers = #tpu.dot_dimension_numbers<[1], [0], [0], [1], [0, 0, 1, 1], [], []>} : vector<8x32xf32>, vector<32x32xf32>, vector<8x32xf32> -> vector<8x32xf32>
    %50 = vector.broadcast %13 : vector<1x32xf32> to vector<8x32xf32>
    %51 = arith.addf %49, %50 : vector<8x32xf32>
    %52 = vector.shape_cast %51 : vector<8x32xf32> to vector<1x8x32xf32>
    %c0_27 = arith.constant 0 : index
    %c0_28 = arith.constant 0 : index
    %c0_29 = arith.constant 0 : index
    %53 = vector.load %arg9[%c0_27, %c0_28, %c0_29] : memref<1x8x32xf32, #tpu.memory_space<vmem>>, vector<1x8x32xf32>
    tpu.vector_store %arg9[%c0_27, %c0_28, %c0_29], %52 {strides = array<i32>} : memref<1x8x32xf32, #tpu.memory_space<vmem>>, vector<1x8x32xf32>,
    return
  }
  func.func @transform_0(%arg0: i32) -> (i32, i32, i32) {
    %c0_i32 = arith.constant 0 : i32
    %c0_i32_0 = arith.constant 0 : i32
    %c0_i32_1 = arith.constant 0 : i32
    return %arg0, %c0_i32, %c0_i32_0 : i32, i32, i32
  }
  func.func @transform_1(%arg0: i32) -> (i32, i32, i32) {
    %c0_i32 = arith.constant 0 : i32
    %c0_i32_0 = arith.constant 0 : i32
    %c0_i32_1 = arith.constant 0 : i32
    return %arg0, %c0_i32, %c0_i32_0 : i32, i32, i32
  }
  func.func @transform_2(%arg0: i32) -> (i32, i32) {
    %c0_i32 = arith.constant 0 : i32
    %c0_i32_0 = arith.constant 0 : i32
    %c0_i32_1 = arith.constant 0 : i32
    return %c0_i32, %c0_i32_0 : i32, i32
  }
  func.func @transform_3(%arg0: i32) -> (i32, i32) {
    %c0_i32 = arith.constant 0 : i32
    %c0_i32_0 = arith.constant 0 : i32
    %c0_i32_1 = arith.constant 0 : i32
    return %c0_i32, %c0_i32_0 : i32, i32
  }
  func.func @transform_4(%arg0: i32) -> (i32, i32) {
    %c0_i32 = arith.constant 0 : i32
    %c0_i32_0 = arith.constant 0 : i32
    %c0_i32_1 = arith.constant 0 : i32
    return %c0_i32, %c0_i32_0 : i32, i32
  }
  func.func @transform_5(%arg0: i32) -> (i32, i32) {
    %c0_i32 = arith.constant 0 : i32
    %c0_i32_0 = arith.constant 0 : i32
    %c0_i32_1 = arith.constant 0 : i32
    return %c0_i32, %c0_i32_0 : i32, i32
  }
  func.func @transform_6(%arg0: i32) -> (i32, i32) {
    %c0_i32 = arith.constant 0 : i32
    %c0_i32_0 = arith.constant 0 : i32
    %c0_i32_1 = arith.constant 0 : i32
    return %c0_i32, %c0_i32_0 : i32, i32
  }
  func.func @transform_7(%arg0: i32) -> (i32, i32) {
    %c0_i32 = arith.constant 0 : i32
    %c0_i32_0 = arith.constant 0 : i32
    %c0_i32_1 = arith.constant 0 : i32
    return %c0_i32, %c0_i32_0 : i32, i32
  }
  func.func @transform_8(%arg0: i32) -> (i32, i32, i32) {
    %c0_i32 = arith.constant 0 : i32
    %c0_i32_0 = arith.constant 0 : i32
    %c0_i32_1 = arith.constant 0 : i32
    return %arg0, %c0_i32, %c0_i32_0 : i32, i32, i32
  }
  func.func @transform_9(%arg0: i32) -> (i32, i32, i32) {
    %c0_i32 = arith.constant 0 : i32
    %c0_i32_0 = arith.constant 0 : i32
    %c0_i32_1 = arith.constant 0 : i32
    return %arg0, %c0_i32, %c0_i32_0 : i32, i32, i32
  }
}

</mosaic_0001>

<llo_original>
// kernel: tpu_custom_call.1
$region0: #{tpu_custom_call.1}
  #allocation0 [shape = 'u32[]', space=smem, size = 0x4, offset = 0x4, fixed_abs, tag = 'smem constant byte address 0x4 - core index']
  #allocation1 [shape = 'u32[72,128]{1,0:T(1,128)}', space=vmem, size = 0x9000, scoped, tag = 'internal scratch']
  %s0 = inlined_call_operand.hbm [shape: f32[2,8,32], index: 0, kind: input, shape index: {}]
  %s1 = inlined_call_operand.hbm [shape: f32[2,8,8], index: 1, kind: input, shape index: {}]
  %s2 = inlined_call_operand.hbm [shape: f32[32,32], index: 2, kind: input, shape index: {}]
  %s3 = inlined_call_operand.hbm [shape: f32[4,32], index: 3, kind: input, shape index: {}]
  %s4 = inlined_call_operand.hbm [shape: f32[32,68], index: 4, kind: input, shape index: {}]
  %s5 = inlined_call_operand.vmem [shape: f32[1,68], index: 5, kind: input, shape index: {}]
  %s6 = inlined_call_operand.hbm [shape: f32[32,32], index: 6, kind: input, shape index: {}]
  %s7 = inlined_call_operand.vmem [shape: f32[1,32], index: 7, kind: input, shape index: {}]
  %s8 = inlined_call_operand.hbm [shape: f32[2,8,32], index: 8, kind: output, shape index: {0}]
  %s9 = inlined_call_operand.hbm [shape: f32[2,8,32], index: 9, kind: output, shape index: {1}]
  %10 = xla_tuple %s8, %s9
  %s11 = sld [smem:[#allocation0]]
  $region97: #{tpu_custom_call.1} parent=0
    _
  %s13 = ssub.s32 1, %s11
  %s14 = scalar_select 0, %s13, %s11
  $region1: #{tpu_custom_call.1} parent=0
    #allocation2 [shape = 'u8[8192]{0}', space=vmem, size = 0x2000, scoped, tag = 'input window, operand 0']
    #allocation3 [shape = 's32[2]{0}', space=sflag, size = 0x8, scoped, tag = 'scoped memory for tpu_custom_call.1']
    #allocation4 [shape = 's32[2]{0}', space=sflag, size = 0x8, scoped, tag = 'scoped memory for tpu_custom_call.1']
    #allocation5 [shape = 'u8[8192]{0}', space=vmem, size = 0x2000, scoped, tag = 'input window, operand 1']
    #allocation6 [shape = 's32[2]{0}', space=sflag, size = 0x8, scoped, tag = 'scoped memory for tpu_custom_call.1']
    #allocation7 [shape = 'u8[16384]{0}', space=vmem, size = 0x4000, scoped, tag = 'input window, operand 2, single buffered']
    #allocation8 [shape = 'u8[2048]{0}', space=vmem, size = 0x800, scoped, tag = 'input window, operand 3, single buffered']
    #allocation9 [shape = 's32[1]{0}', space=sflag, size = 0x4, scoped, tag = 'scoped memory for tpu_custom_call.1']
    #allocation10 [shape = 'u8[16384]{0}', space=vmem, size = 0x4000, scoped, tag = 'input window, operand 4, single buffered']
    #allocation11 [shape = 'u8[16384]{0}', space=vmem, size = 0x4000, scoped, tag = 'input window, operand 6, single buffered']
    #allocation12 [shape = 's32[1]{0}', space=sflag, size = 0x4, scoped, tag = 'scoped memory for tpu_custom_call.1']
    #allocation13 [shape = 'u8[8192]{0}', space=vmem, size = 0x2000, scoped, tag = 'output window, operand 0']
    #allocation14 [shape = 'u8[8192]{0}', space=vmem, size = 0x2000, scoped, tag = 'output window, operand 1']
    #allocation15 [shape = 's32[2]{0}', space=sflag, size = 0x8, scoped, tag = 'scoped memory for tpu_custom_call.1']
    %15 = vsyncpa [#allocation3], 0
    %s16 = scalar_lea.sflag [#allocation3], 1
    %17 = vsyncpa %s16, 0
    %18 = vsyncpa [#allocation6], 0
    %s19 = scalar_lea.sflag [#allocation6], 1
    %20 = vsyncpa %s19, 0
    %21 = vsyncpa [#allocation9], 0
    %22 = vsyncpa [#allocation12], 0
    %23 = vsyncpa [#allocation4], 0
    %s24 = scalar_lea.sflag [#allocation4], 1
    %25 = vsyncpa %s24, 0
    %26 = vsyncpa [#allocation15], 0
    %s27 = scalar_lea.sflag [#allocation15], 1
    %28 = vsyncpa %s27, 0
    loop: start=0, step=1, limit=4
    $region2: #{tpu_custom_call.1} parent=1 // loop_pre_header
      _
    $region3: #{tpu_custom_call.1} parent=1 // loop_header
      %s30 = sphi 0, %s34
      %p31 = scmp.ge.s32.totalorder %s30, 4
      %s40 = sphi 0, %s42
      %s43 = sphi 0, %s40
      %s44 = sphi 0, %s43
      %s60 = sphi 0, %s44
      %s66 = sphi 0, %s68
      %s69 = sphi 0, %s66
      %s70 = sphi 0, %s69
      %s86 = sphi 0, %s70
      %s90 = sphi 0, %s90
      %s92 = sphi 0, %s90
      %s93 = sphi 0, %s92
      %s107 = sphi 0, %s93
      %s111 = sphi 0, %s111
      %s113 = sphi 0, %s111
      %s114 = sphi 0, %s113
      %s128 = sphi 0, %s114
      %s132 = sphi 0, %s132
      %s134 = sphi 0, %s132
      %s135 = sphi 0, %s134
      %s149 = sphi 0, %s135
      %s153 = sphi 0, %s153
      %s155 = sphi 0, %s153
      %s156 = sphi 0, %s155
      %s170 = sphi 0, %s156
      %s174 = sphi 0, %s174
      %s176 = sphi 0, %s174
      %s177 = sphi 0, %s176
      %s191 = sphi 0, %s177
      %s195 = sphi 0, %s195
      %s197 = sphi 0, %s195
      %s198 = sphi 0, %s197
      %s212 = sphi 0, %s198
      %s218 = sphi 0, %s220
      %s221 = sphi 0, %s218
      %s222 = sphi 0, %s221
      %s238 = sphi 0, %s222
      %s244 = sphi 0, %s246
      %s247 = sphi 0, %s244
      %s248 = sphi 0, %s247
      %s264 = sphi 0, %s248
    $region4: #{tpu_custom_call.1} parent=1 // loop_header_branch
      %33 = sbr.rel (%p31) target = $region8
    $region5: #{tpu_custom_call.1} parent=1 // loop_body
      %s35 = ssub.s32 %s30, 1
      %s36 = ssub.s32 %s30, 2
      %s37 = sadd.s32 %s30, 1
      %s38 = ssub.s32 %s30, %s37
      %p39 = scmp.eq.s32.totalorder %s38, 0
      %s41 = sadd.s32 %s40, 1
      %s42 = scalar_select %p39, %s40, %s41
      %p45 = pneg %p39
      %p46 = scmp.eq.s32.totalorder %s30, 1
      %p47 = por %p45, %p46
      %p48 = scmp.ne.s32.totalorder %s40, %s43
      %p49 = scmp.eq.s32.totalorder %s30, 0
      %p50 = por %p48, %p49
      %p51 = scmp.ne.s32.totalorder %s40, %s43
      %p52 = scmp.eq.s32.totalorder %s35, 1
      %p53 = por %p51, %p52
      %p54 = scmp.ne.s32.totalorder %s43, %s44
      %p55 = scmp.eq.s32.totalorder %s35, 0
      %p56 = por %p54, %p55
      %p57 = scmp.ne.s32.totalorder %s43, %s44
      %p58 = scmp.eq.s32.totalorder %s36, 1
      %p59 = por %p57, %p58
      %p61 = scmp.ne.s32.totalorder %s44, %s60
      %p62 = scmp.eq.s32.totalorder %s36, 0
      %p63 = por %p61, %p62
      %s64 = ssub.s32 %s30, %s37
      %p65 = scmp.eq.s32.totalorder %s64, 0
      %s67 = sadd.s32 %s66, 1
      %s68 = scalar_select %p65, %s66, %s67
      %p71 = pneg %p65
      %p72 = scmp.eq.s32.totalorder %s30, 1
      %p73 = por %p71, %p72
      %p74 = scmp.ne.s32.totalorder %s66, %s69
      %p75 = scmp.eq.s32.totalorder %s30, 0
      %p76 = por %p74, %p75
      %p77 = scmp.ne.s32.totalorder %s66, %s69
      %p78 = scmp.eq.s32.totalorder %s35, 1
      %p79 = por %p77, %p78
      %p80 = scmp.ne.s32.totalorder %s69, %s70
      %p81 = scmp.eq.s32.totalorder %s35, 0
      %p82 = por %p80, %p81
      %p83 = scmp.ne.s32.totalorder %s69, %s70
      %p84 = scmp.eq.s32.totalorder %s36, 1
      %p85 = por %p83, %p84
      %p87 = scmp.ne.s32.totalorder %s70, %s86
      %p88 = scmp.eq.s32.totalorder %s36, 0
      %p89 = por %p87, %p88
      %s91 = sadd.s32 %s90, 1
      %p94 = scmp.eq.s32.totalorder %s30, 1
      %p95 = scmp.ne.s32.totalorder %s90, %s92
      %p96 = scmp.eq.s32.totalorder %s30, 0
      %p97 = por %p95, %p96
      %p98 = scmp.ne.s32.totalorder %s90, %s92
      %p99 = scmp.eq.s32.totalorder %s35, 1
      %p100 = por %p98, %p99
      %p101 = scmp.ne.s32.totalorder %s92, %s93
      %p102 = scmp.eq.s32.totalorder %s35, 0
      %p103 = por %p101, %p102
      %p104 = scmp.ne.s32.totalorder %s92, %s93
      %p105 = scmp.eq.s32.totalorder %s36, 1
      %p106 = por %p104, %p105
      %p108 = scmp.ne.s32.totalorder %s93, %s107
      %p109 = scmp.eq.s32.totalorder %s36, 0
      %p110 = por %p108, %p109
      %s112 = sadd.s32 %s111, 1
      %p115 = scmp.eq.s32.totalorder %s30, 1
      %p116 = scmp.ne.s32.totalorder %s111, %s113
      %p117 = scmp.eq.s32.totalorder %s30, 0
      %p118 = por %p116, %p117
      %p119 = scmp.ne.s32.totalorder %s111, %s113
      %p120 = scmp.eq.s32.totalorder %s35, 1
      %p121 = por %p119, %p120
      %p122 = scmp.ne.s32.totalorder %s113, %s114
      %p123 = scmp.eq.s32.totalorder %s35, 0
      %p124 = por %p122, %p123
      %p125 = scmp.ne.s32.totalorder %s113, %s114
      %p126 = scmp.eq.s32.totalorder %s36, 1
      %p127 = por %p125, %p126
      %p129 = scmp.ne.s32.totalorder %s114, %s128
      %p130 = scmp.eq.s32.totalorder %s36, 0
      %p131 = por %p129, %p130
      %s133 = sadd.s32 %s132, 1
      %p136 = scmp.eq.s32.totalorder %s30, 1
      %p137 = scmp.ne.s32.totalorder %s132, %s134
      %p138 = scmp.eq.s32.totalorder %s30, 0
      %p139 = por %p137, %p138
      %p140 = scmp.ne.s32.totalorder %s132, %s134
      %p141 = scmp.eq.s32.totalorder %s35, 1
      %p142 = por %p140, %p141
      %p143 = scmp.ne.s32.totalorder %s134, %s135
      %p144 = scmp.eq.s32.totalorder %s35, 0
      %p145 = por %p143, %p144
      %p146 = scmp.ne.s32.totalorder %s134, %s135
      %p147 = scmp.eq.s32.totalorder %s36, 1
      %p148 = por %p146, %p147
      %p150 = scmp.ne.s32.totalorder %s135, %s149
      %p151 = scmp.eq.s32.totalorder %s36, 0
      %p152 = por %p150, %p151
      %s154 = sadd.s32 %s153, 1
      %p157 = scmp.eq.s32.totalorder %s30, 1
      %p158 = scmp.ne.s32.totalorder %s153, %s155
      %p159 = scmp.eq.s32.totalorder %s30, 0
      %p160 = por %p158, %p159
      %p161 = scmp.ne.s32.totalorder %s153, %s155
      %p162 = scmp.eq.s32.totalorder %s35, 1
      %p163 = por %p161, %p162
      %p164 = scmp.ne.s32.totalorder %s155, %s156
      %p165 = scmp.eq.s32.totalorder %s35, 0
      %p166 = por %p164, %p165
      %p167 = scmp.ne.s32.totalorder %s155, %s156
      %p168 = scmp.eq.s32.totalorder %s36, 1
      %p169 = por %p167, %p168
      %p171 = scmp.ne.s32.totalorder %s156, %s170
      %p172 = scmp.eq.s32.totalorder %s36, 0
      %p173 = por %p171, %p172
      %s175 = sadd.s32 %s174, 1
      %p178 = scmp.eq.s32.totalorder %s30, 1
      %p179 = scmp.ne.s32.totalorder %s174, %s176
      %p180 = scmp.eq.s32.totalorder %s30, 0
      %p181 = por %p179, %p180
      %p182 = scmp.ne.s32.totalorder %s174, %s176
      %p183 = scmp.eq.s32.totalorder %s35, 1
      %p184 = por %p182, %p183
      %p185 = scmp.ne.s32.totalorder %s176, %s177
      %p186 = scmp.eq.s32.totalorder %s35, 0
      %p187 = por %p185, %p186
      %p188 = scmp.ne.s32.totalorder %s176, %s177
      %p189 = scmp.eq.s32.totalorder %s36, 1
      %p190 = por %p188, %p189
      %p192 = scmp.ne.s32.totalorder %s177, %s191
      %p193 = scmp.eq.s32.totalorder %s36, 0
      %p194 = por %p192, %p193
      %s196 = sadd.s32 %s195, 1
      %p199 = scmp.eq.s32.totalorder %s30, 1
      %p200 = scmp.ne.s32.totalorder %s195, %s197
      %p201 = scmp.eq.s32.totalorder %s30, 0
      %p202 = por %p200, %p201
      %p203 = scmp.ne.s32.totalorder %s195, %s197
      %p204 = scmp.eq.s32.totalorder %s35, 1
      %p205 = por %p203, %p204
      %p206 = scmp.ne.s32.totalorder %s197, %s198
      %p207 = scmp.eq.s32.totalorder %s35, 0
      %p208 = por %p206, %p207
      %p209 = scmp.ne.s32.totalorder %s197, %s198
      %p210 = scmp.eq.s32.totalorder %s36, 1
      %p211 = por %p209, %p210
      %p213 = scmp.ne.s32.totalorder %s198, %s212
      %p214 = scmp.eq.s32.totalorder %s36, 0
      %p215 = por %p213, %p214
      %s216 = ssub.s32 %s30, %s37
      %p217 = scmp.eq.s32.totalorder %s216, 0
      %s219 = sadd.s32 %s218, 1
      %s220 = scalar_select %p217, %s218, %s219
      %p223 = pneg %p217
      %p224 = scmp.eq.s32.totalorder %s30, 1
      %p225 = por %p223, %p224
      %p226 = scmp.ne.s32.totalorder %s218, %s221
      %p227 = scmp.eq.s32.totalorder %s30, 0
      %p228 = por %p226, %p227
      %p229 = scmp.ne.s32.totalorder %s218, %s221
      %p230 = scmp.eq.s32.totalorder %s35, 1
      %p231 = por %p229, %p230
      %p232 = scmp.ne.s32.totalorder %s221, %s222
      %p233 = scmp.eq.s32.totalorder %s35, 0
      %p234 = por %p232, %p233
      %p235 = scmp.ne.s32.totalorder %s221, %s222
      %p236 = scmp.eq.s32.totalorder %s36, 1
      %p237 = por %p235, %p236
      %p239 = scmp.ne.s32.totalorder %s222, %s238
      %p240 = scmp.eq.s32.totalorder %s36, 0
      %p241 = por %p239, %p240
      %s242 = ssub.s32 %s30, %s37
      %p243 = scmp.eq.s32.totalorder %s242, 0
      %s245 = sadd.s32 %s244, 1
      %s246 = scalar_select %p243, %s244, %s245
      %p249 = pneg %p243
      %p250 = scmp.eq.s32.totalorder %s30, 1
      %p251 = por %p249, %p250
      %p252 = scmp.ne.s32.totalorder %s244, %s247
      %p253 = scmp.eq.s32.totalorder %s30, 0
      %p254 = por %p252, %p253
      %p255 = scmp.ne.s32.totalorder %s244, %s247
      %p256 = scmp.eq.s32.totalorder %s35, 1
      %p257 = por %p255, %p256
      %p258 = scmp.ne.s32.totalorder %s247, %s248
      %p259 = scmp.eq.s32.totalorder %s35, 0
      %p260 = por %p258, %p259
      %p261 = scmp.ne.s32.totalorder %s247, %s248
      %p262 = scmp.eq.s32.totalorder %s36, 1
      %p263 = por %p261, %p262
      %p265 = scmp.ne.s32.totalorder %s248, %s264
      %p266 = scmp.eq.s32.totalorder %s36, 0
      %p267 = por %p265, %p266
      %p268 = scmp.le.s32.totalorder 1, %s30
      %p269 = scmp.lt.s32.totalorder %s30, 3
      %p270 = pnand %p268, %p269
      %p271 = pneg %p270
      // Predicated region
      $region9: #{tpu_custom_call.1} parent=5 // pred_check
        _
      $region10: #{tpu_custom_call.1} parent=5 // pred_check_branch
        %273 = sbr.rel (%p270) target = $region12
      $region11: #{tpu_custom_call.1} parent=5 // pred_region
        %s274 = ssub.s32 %s30, 1
        // Predicated region
        $region13: #{tpu_custom_call.1} parent=11 // pred_check
          %p275 = pneg %p103
        $region14: #{tpu_custom_call.1} parent=11 // pred_check_branch
          %277 = sbr.rel (%p275) target = $region16
        $region15: #{tpu_custom_call.1} parent=11 // pred_region
          %279 = vsyncadd [#allocation6], 0
          %s280 = sshll.u32 %s2, 4
          %s281 = int_to_ptr.hbm [resolvable:$true] %s280
          %s282 = sshll.u32 [#allocation7], 4
          %s283 = int_to_ptr.vmem [resolvable:$true] %s282
          %288 = dma.hbm_to_vmem [thread:$0]  %s281, 512, %s283, [#allocation6], 128, 128, 8
        $region16: #{tpu_custom_call.1} parent=11 // pred_fallthru
          _
        // Predicated region
        $region17: #{tpu_custom_call.1} parent=11 // pred_check
          %p289 = pneg %p124
        $region18: #{tpu_custom_call.1} parent=11 // pred_check_branch
          %291 = sbr.rel (%p289) target = $region20
        $region19: #{tpu_custom_call.1} parent=11 // pred_region
          %293 = vsyncadd [#allocation9], 0
          %s295 = sshll.u32 %s3, 4
          %s296 = int_to_ptr.hbm [resolvable:$true] %s295
          %s297 = sshll.u32 [#allocation8], 4
          %s298 = int_to_ptr.vmem [resolvable:$true] %s297
          %300 = dma.hbm_to_vmem [thread:$0]  %s296, 64, %s298, [#allocation9]
        $region20: #{tpu_custom_call.1} parent=11 // pred_fallthru
          _
        // Predicated region
        $region21: #{tpu_custom_call.1} parent=11 // pred_check
          %p301 = pneg %p145
        $region22: #{tpu_custom_call.1} parent=11 // pred_check_branch
          %303 = sbr.rel (%p301) target = $region24
        $region23: #{tpu_custom_call.1} parent=11 // pred_region
          %305 = vsyncadd [#allocation9], 0
          %s306 = sshll.u32 %s4, 4
          %s307 = int_to_ptr.hbm [resolvable:$true] %s306
          %s308 = sshll.u32 [#allocation10], 4
          %s309 = int_to_ptr.vmem [resolvable:$true] %s308
          %314 = dma.hbm_to_vmem [thread:$0]  %s307, 512, %s309, [#allocation9], 128, 128, 8
        $region24: #{tpu_custom_call.1} parent=11 // pred_fallthru
          _
        // Predicated region
        $region25: #{tpu_custom_call.1} parent=11 // pred_check
          %p315 = pneg %p166
        $region26: #{tpu_custom_call.1} parent=11 // pred_check_branch
          %317 = sbr.rel (%p315) target = $region28
        $region27: #{tpu_custom_call.1} parent=11 // pred_region
          _
        $region28: #{tpu_custom_call.1} parent=11 // pred_fallthru
          _
        // Predicated region
        $region29: #{tpu_custom_call.1} parent=11 // pred_check
          %p318 = pneg %p187
        $region30: #{tpu_custom_call.1} parent=11 // pred_check_branch
          %320 = sbr.rel (%p318) target = $region32
        $region31: #{tpu_custom_call.1} parent=11 // pred_region
          %322 = vsyncadd [#allocation12], 0
          %s323 = sshll.u32 %s6, 4
          %s324 = int_to_ptr.hbm [resolvable:$true] %s323
          %s325 = sshll.u32 [#allocation11], 4
          %s326 = int_to_ptr.vmem [resolvable:$true] %s325
          %331 = dma.hbm_to_vmem [thread:$0]  %s324, 512, %s326, [#allocation12], 128, 128, 8
        $region32: #{tpu_custom_call.1} parent=11 // pred_fallthru
          _
        // Predicated region
        $region33: #{tpu_custom_call.1} parent=11 // pred_check
          %p332 = pneg %p208
        $region34: #{tpu_custom_call.1} parent=11 // pred_check_branch
          %334 = sbr.rel (%p332) target = $region36
        $region35: #{tpu_custom_call.1} parent=11 // pred_region
          _
        $region36: #{tpu_custom_call.1} parent=11 // pred_fallthru
          _
      $region12: #{tpu_custom_call.1} parent=5 // pred_fallthru
        _
      %p335 = scmp.lt.s32.totalorder %s30, 2
      // Predicated region
      $region37: #{tpu_custom_call.1} parent=5 // pred_check
        %p336 = pneg %p335
      $region38: #{tpu_custom_call.1} parent=5 // pred_check_branch
        %338 = sbr.rel (%p336) target = $region40
      $region39: #{tpu_custom_call.1} parent=5 // pred_region
        // Predicated region
        $region41: #{tpu_custom_call.1} parent=39 // pred_check
          %p339 = pneg %p50
        $region42: #{tpu_custom_call.1} parent=39 // pred_check_branch
          %341 = sbr.rel (%p339) target = $region44
        $region43: #{tpu_custom_call.1} parent=39 // pred_region
          %s342 = sand.u32 %s40, 1
          %s343 = scalar_lea.sflag [#allocation3], %s342
          %s344 = sand.u32 %s40, 1
          %s345 = smul.addr %s344, 8
          %s346 = scalar_lea.vmem [#allocation2], %s345
          %348 = vsyncadd %s343, 0
          %s349 = smul.addr %s30, 8
          %s350 = scalar_lea.hbm %s0, %s349
          %s352 = sshll.u32 %s350, 4
          %s353 = int_to_ptr.hbm [resolvable:$true] %s352
          %s354 = sshll.u32 %s346, 4
          %s355 = int_to_ptr.vmem [resolvable:$true] %s354
          %357 = dma.hbm_to_vmem [thread:$0]  %s353, 128, %s355, %s343
        $region44: #{tpu_custom_call.1} parent=39 // pred_fallthru
          _
        // Predicated region
        $region45: #{tpu_custom_call.1} parent=39 // pred_check
          %p358 = pneg %p76
        $region46: #{tpu_custom_call.1} parent=39 // pred_check_branch
          %360 = sbr.rel (%p358) target = $region48
        $region47: #{tpu_custom_call.1} parent=39 // pred_region
          %s361 = sand.u32 %s30, 1
          %s362 = scalar_lea.sflag [#allocation6], %s361
          %s363 = sand.u32 %s66, 1
          %s364 = smul.addr %s363, 8
          %s365 = scalar_lea.vmem [#allocation5], %s364
          %367 = vsyncadd %s362, 0
          %s368 = smul.addr %s30, 8
          %s369 = scalar_lea.hbm %s1, %s368
          %s371 = sshll.u32 %s369, 4
          %s372 = int_to_ptr.hbm [resolvable:$true] %s371
          %s373 = sshll.u32 %s365, 4
          %s374 = int_to_ptr.vmem [resolvable:$true] %s373
          %376 = dma.hbm_to_vmem [thread:$0]  %s372, 128, %s374, %s362
        $region48: #{tpu_custom_call.1} parent=39 // pred_fallthru
          _
      $region40: #{tpu_custom_call.1} parent=5 // pred_fallthru
        _
      %p377 = scmp.le.s32.totalorder 1, %s30
      %p378 = scmp.lt.s32.totalorder %s30, 3
      %p379 = pnand %p377, %p378
      %p380 = pneg %p379
      // Predicated region
      $region49: #{tpu_custom_call.1} parent=5 // pred_check
        _
      $region50: #{tpu_custom_call.1} parent=5 // pred_check_branch
        %382 = sbr.rel (%p379) target = $region52
      $region51: #{tpu_custom_call.1} parent=5 // pred_region
        %s383 = ssub.s32 %s30, 1
        %s384 = sand.u32 %s43, 1
        %s385 = scalar_lea.sflag [#allocation3], %s384
        %s386 = sand.u32 %s43, 1
        %s387 = smul.addr %s386, 8
        %s388 = scalar_lea.vmem [#allocation2], %s387
        // Predicated region
        $region53: #{tpu_custom_call.1} parent=51 // pred_check
          %p389 = pneg %p56
        $region54: #{tpu_custom_call.1} parent=51 // pred_check_branch
          %391 = sbr.rel (%p389) target = $region56
        $region55: #{tpu_custom_call.1} parent=51 // pred_region
          %393 = dma.done %s385, 128
        $region56: #{tpu_custom_call.1} parent=51 // pred_fallthru
          _
        %s394 = sand.u32 %s35, 1
        %s395 = scalar_lea.sflag [#allocation6], %s394
        %s396 = sand.u32 %s69, 1
        %s397 = smul.addr %s396, 8
        %s398 = scalar_lea.vmem [#allocation5], %s397
        // Predicated region
        $region57: #{tpu_custom_call.1} parent=51 // pred_check
          %p399 = pneg %p82
        $region58: #{tpu_custom_call.1} parent=51 // pred_check_branch
          %401 = sbr.rel (%p399) target = $region60
        $region59: #{tpu_custom_call.1} parent=51 // pred_region
          %403 = dma.done %s395, 128
        $region60: #{tpu_custom_call.1} parent=51 // pred_fallthru
          _
        // Predicated region
        $region61: #{tpu_custom_call.1} parent=51 // pred_check
          %p404 = pneg %p103
        $region62: #{tpu_custom_call.1} parent=51 // pred_check_branch
          %406 = sbr.rel (%p404) target = $region64
        $region63: #{tpu_custom_call.1} parent=51 // pred_region
          %408 = dma.done [#allocation6], 512
        $region64: #{tpu_custom_call.1} parent=51 // pred_fallthru
          _
        // Predicated region
        $region65: #{tpu_custom_call.1} parent=51 // pred_check
          %p409 = pneg %p124
        $region66: #{tpu_custom_call.1} parent=51 // pred_check_branch
          %411 = sbr.rel (%p409) target = $region68
        $region67: #{tpu_custom_call.1} parent=51 // pred_region
          %413 = dma.done [#allocation9], 64
        $region68: #{tpu_custom_call.1} parent=51 // pred_fallthru
          _
        // Predicated region
        $region69: #{tpu_custom_call.1} parent=51 // pred_check
          %p414 = pneg %p145
        $region70: #{tpu_custom_call.1} parent=51 // pred_check_branch
          %416 = sbr.rel (%p414) target = $region72
        $region71: #{tpu_custom_call.1} parent=51 // pred_region
          %418 = dma.done [#allocation9], 512
        $region72: #{tpu_custom_call.1} parent=51 // pred_fallthru
          _
        // Predicated region
        $region73: #{tpu_custom_call.1} parent=51 // pred_check
          %p419 = pneg %p187
        $region74: #{tpu_custom_call.1} parent=51 // pred_check_branch
          %421 = sbr.rel (%p419) target = $region76
        $region75: #{tpu_custom_call.1} parent=51 // pred_region
          %423 = dma.done [#allocation12], 512
        $region76: #{tpu_custom_call.1} parent=51 // pred_fallthru
          _
        %s424 = sand.u32 %s43, 1
        %s425 = scalar_lea.sflag [#allocation3], %s424
        %s426 = sand.u32 %s43, 1
        %s427 = smul.addr %s426, 8
        %s428 = scalar_lea.vmem [#allocation2], %s427
        %p429 = pneg %p56
        %p430 = pneg %p53
        %s431 = sand.u32 %s35, 1
        %s432 = scalar_lea.sflag [#allocation6], %s431
        %s433 = sand.u32 %s69, 1
        %s434 = smul.addr %s433, 8
        %s435 = scalar_lea.vmem [#allocation5], %s434
        %p436 = pneg %p82
        %p437 = pneg %p79
        %p438 = pneg %p103
        %p439 = pneg %p100
        %p440 = pneg %p124
        %p441 = pneg %p121
        %p442 = pneg %p145
        %p443 = pneg %p142
        %p444 = pneg %p166
        %p445 = pneg %p163
        %p446 = pneg %p187
        %p447 = pneg %p184
        %p448 = pneg %p208
        %p449 = pneg %p205
        %p450 = pneg %p234
        %p451 = pneg %p231
        %s452 = sand.u32 %s221, 1
        %s453 = scalar_lea.sflag [#allocation4], %s452
        %s454 = sand.u32 %s221, 1
        %s455 = smul.addr %s454, 8
        %s456 = scalar_lea.vmem [#allocation13], %s455
        %p457 = pneg %p260
        %p458 = pneg %p257
        %s459 = sand.u32 %s247, 1
        %s460 = scalar_lea.sflag [#allocation15], %s459
        %s461 = sand.u32 %s247, 1
        %s462 = smul.addr %s461, 8
        %s463 = scalar_lea.vmem [#allocation14], %s462
        %v464 = vld [vmem:[%s388] sm:$0xff]
        %v465 = vld [vmem:[#allocation10] sm:$0xff]
        %v466 = vld [vmem:[#allocation10 + $0x8] sm:$0xff]
        %v467 = vld [vmem:[#allocation10 + $0x10] sm:$0xff]
        %v468 = vld [vmem:[#allocation10 + $0x18] sm:$0xff]
        %v469 = vld [vmem:[%s5] sm:$0x1]
        %v471 = vperm.slane %v469, 0
        %vm473 = vcmask 261120
        %v475 = vsel %vm473, %v464, 0
        %477 = vmatpush.msra.mxu0 0.0
        %478 = vmatpush.msra.mxu0 0.0
        %479 = vmatpush.msra.mxu0 0.0
        %480 = vmatpush.msra.mxu0 0.0
        %481 = vmatpush.msra.mxu0 0.0
        %482 = vmatpush.msra.mxu0 0.0
        %483 = vmatpush.msra.mxu0 0.0
        %484 = vmatpush.msra.mxu0 0.0
        %485 = vmatpush.msra.mxu0 0.0
        %486 = vmatpush.msra.mxu0 0.0
        %487 = vmatpush.msra.mxu0 0.0
        %488 = vmatpush.msra.mxu0 0.0
        %489 = vmatpush.msra.mxu0 %v468
        %490 = vmatpush.msra.mxu0 %v467
        %491 = vmatpush.msra.mxu0 %v466
        %492 = vmatpush.msra.mxu0 %v465
        %493 = vmatmul.f32.gmra.mxu0 %v475
        %v494 = vpop.f32.mrf.mxu0
        %v495 = vadd.f32 %v471, %v494
        %496 = vdwg.mxu0
        %v497 = vld [vmem:[#allocation7] sm:$0xff]
        %v498 = vld [vmem:[#allocation7 + $0x8] sm:$0xff]
        %v499 = vld [vmem:[#allocation7 + $0x10] sm:$0xff]
        %v500 = vld [vmem:[#allocation7 + $0x18] sm:$0xff]
        %v501 = vld [vmem:[#allocation8] sm:$0xf]
        %v502 = vld [vmem:[#allocation11] sm:$0xff]
        %v503 = vld [vmem:[#allocation11 + $0x8] sm:$0xff]
        %v504 = vld [vmem:[#allocation11 + $0x10] sm:$0xff]
        %v505 = vld [vmem:[#allocation11 + $0x18] sm:$0xff]
        %v506 = vld [vmem:[%s7] sm:$0x1]
        %508 = vrot.lane.b32.xlu0 %v495, 96
        %v509 = vpop.permute.xlu0 %508
        %511 = vxpose.xlu0.b32.start [1/16] %v509, 128
        %512 = vxpose.xlu0.b32.cont [2/16] 0.0, 128
        %513 = vxpose.xlu0.b32.cont [3/16] 0.0, 128
        %514 = vxpose.xlu0.b32.cont [4/16] 0.0, 128
        %515 = vxpose.xlu0.b32.cont [5/16] 0.0, 128
        %516 = vxpose.xlu0.b32.cont [6/16] 0.0, 128
        %517 = vxpose.xlu0.b32.cont [7/16] 0.0, 128
        %518 = vxpose.xlu0.b32.cont [8/16] 0.0, 128
        %519 = vxpose.xlu0.b32.cont [9/16] 0.0, 128
        %520 = vxpose.xlu0.b32.cont [10/16] 0.0, 128
        %521 = vxpose.xlu0.b32.cont [11/16] 0.0, 128
        %522 = vxpose.xlu0.b32.cont [12/16] 0.0, 128
        %523 = vxpose.xlu0.b32.cont [13/16] 0.0, 128
        %524 = vxpose.xlu0.b32.cont [14/16] 0.0, 128
        %525 = vxpose.xlu0.b32.cont [15/16] 0.0, 128
        %526 = vxpose.xlu0.b32.end [16/16] 0.0, 128
        %v527 = vpop.trf.xlu0
        %v528 = vpop.trf.xlu0
        %v529 = vpop.trf.xlu0
        %v530 = vpop.trf.xlu0
        %v531 = vpop.trf.xlu0
        %v532 = vpop.trf.xlu0
        %v533 = vpop.trf.xlu0
        %v534 = vpop.trf.xlu0
        %v535 = vpop.trf.xlu0
        %v536 = vpop.trf.xlu0
        %v537 = vpop.trf.xlu0
        %v538 = vpop.trf.xlu0
        %v539 = vpop.trf.xlu0
        %v540 = vpop.trf.xlu0
        %v541 = vpop.trf.xlu0
        %v542 = vpop.trf.xlu0
        %547 = vrot.lane.b32.xlu0 %v527, 8
        %v548 = vpop.permute.xlu0 %547
        %549 = vrot.lane.b32.xlu0 %v528, 8
        %v550 = vpop.permute.xlu0 %549
        %551 = vrot.lane.b32.xlu0 %v529, 8
        %v552 = vpop.permute.xlu0 %551
        %553 = vrot.lane.b32.xlu0 %v530, 8
        %v554 = vpop.permute.xlu0 %553
        %559 = vrot.lane.b32.xlu0 %v527, 16
        %v560 = vpop.permute.xlu0 %559
        %561 = vrot.lane.b32.xlu0 %v528, 16
        %v562 = vpop.permute.xlu0 %561
        %563 = vrot.lane.b32.xlu0 %v529, 16
        %v564 = vpop.permute.xlu0 %563
        %565 = vrot.lane.b32.xlu0 %v530, 16
        %v566 = vpop.permute.xlu0 %565
        %571 = vrot.lane.b32.xlu0 %v527, 24
        %v572 = vpop.permute.xlu0 %571
        %573 = vrot.lane.b32.xlu0 %v528, 24
        %v574 = vpop.permute.xlu0 %573
        %575 = vrot.lane.b32.xlu0 %v529, 24
        %v576 = vpop.permute.xlu0 %575
        %577 = vrot.lane.b32.xlu0 %v530, 24
        %v578 = vpop.permute.xlu0 %577
        %vm583 = vcmask 64512
        %v584 = vsel %vm583, %v527, %v548
        %v585 = vsel %vm583, %v528, %v550
        %v586 = vsel %vm583, %v529, %v552
        %v587 = vsel %vm583, %v530, %v554
        %vm588 = vcmask 130048
        %v589 = vsel %vm588, %v584, %v560
        %v590 = vsel %vm588, %v585, %v562
        %v591 = vsel %vm588, %v586, %v564
        %v592 = vsel %vm588, %v587, %v566
        %vm593 = vcmask 195584
        %v594 = vsel %vm593, %v589, %v572
        %v595 = vsel %vm593, %v590, %v574
        %v596 = vsel %vm593, %v591, %v576
        %v597 = vsel %vm593, %v592, %v578
        %v598 = vmul.f32 %v594, %v497
        %v599 = vmul.f32 %v595, %v498
        %v600 = vmul.f32 %v596, %v499
        %v601 = vmul.f32 %v597, %v500
        %v602 = vld [vmem:[%s398] sm:$0xff]
        %604 = vrot.lane.b32.xlu0 %v602, 8
        %v605 = vpop.permute.xlu0 %604
        %607 = vrot.lane.b32.xlu0 %v602, 16
        %v608 = vpop.permute.xlu0 %607
        %610 = vrot.lane.b32.xlu0 %v602, 24
        %v611 = vpop.permute.xlu0 %610
        %v613 = vsel %vm583, %v602, %v605
        %v614 = vsel %vm588, %v613, %v608
        %v615 = vsel %vm593, %v614, %v611
        %v616 = vsel %vm473, %v495, 0
        %618 = vmatpush.msra.mxu0 0.0
        %619 = vmatpush.msra.mxu0 0.0
        %620 = vmatpush.msra.mxu0 0.0
        %621 = vmatpush.msra.mxu0 0.0
        %622 = vmatpush.msra.mxu0 0.0
        %623 = vmatpush.msra.mxu0 0.0
        %624 = vmatpush.msra.mxu0 0.0
        %625 = vmatpush.msra.mxu0 0.0
        %626 = vmatpush.msra.mxu0 0.0
        %627 = vmatpush.msra.mxu0 0.0
        %628 = vmatpush.msra.mxu0 0.0
        %629 = vmatpush.msra.mxu0 0.0
        %630 = vmatpush.msra.mxu0 %v601
        %631 = vmatpush.msra.mxu0 %v600
        %632 = vmatpush.msra.mxu0 %v599
        %633 = vmatpush.msra.mxu0 %v598
        %634 = vmatmul.f32.gmra.mxu0 %v616
        %v635 = vpop.f32.mrf.mxu0
        %v636 = vadd.f32 %v615, %v635
        %637 = vdwg.mxu0
        %v638 = vsel %vm473, %v636, -inf
        %639 = vmax.xlane.f32.xlu0 %v638
        %v640 = vpop.xlane.xlu0 %639
        %v641 = vsub.f32 %v636, %v640
        %v642 = vmul.f32 %v641, 1.442695
        %v643 = vpow.pop %v642
        %v645 = vsel %vm473, %v643, 0
        %647 = vmatpush.msra.mxu0 0.0
        %648 = vmatpush.msra.mxu0 0.0
        %649 = vmatpush.msra.mxu0 0.0
        %650 = vmatpush.msra.mxu0 0.0
        %651 = vmatpush.msra.mxu0 0.0
        %652 = vmatpush.msra.mxu0 0.0
        %653 = vmatpush.msra.mxu0 0.0
        %654 = vmatpush.msra.mxu0 0.0
        %655 = vmatpush.msra.mxu0 0.0
        %656 = vmatpush.msra.mxu0 0.0
        %657 = vmatpush.msra.mxu0 0.0
        %658 = vmatpush.msra.mxu0 0.0
        %659 = vmatpush.msra.mxu0 %v500
        %660 = vmatpush.msra.mxu0 %v499
        %661 = vmatpush.msra.mxu0 %v498
        %662 = vmatpush.msra.mxu0 %v497
        %663 = vmatmul.f32.gmra.mxu0 %v645
        %v664 = vpop.f32.mrf.mxu0
        %v665 = vadd.f32 0.0, %v664
        %666 = vdwg.mxu0
        %v667 = vrcp.pop %v665
        %v668 = vmul.f32 %v665, %v667
        %v669 = vsub.f32 1.0, %v668
        %v670 = vmul.f32 %v667, %v669
        %v671 = vadd.f32 %v667, %v670
        %vm672 = vweird.f32 %v665
        %vm673 = vweird.f32 %v667
        %vm674 = vmor %vm672, %vm673
        %v675 = vsel %vm674, %v667, %v671
        %v676 = vand.u32 2147483647, %v665
        %vm677 = vcmp.eq.f32.partialorder %v676, 8.507059e+37
        %v678 = vand.u32 %v665, 2147483648
        %v679 = vor.u32 1.1754944e-38, %v678
        %v680 = vsel %vm677, %v679, %v675
        %v681 = vmul.f32 1.0, %v680
        %v682 = vmul.f32 %v643, %v681
        %683 = vst.msk [vmem:[%s463] sm:$0xff] %vm473, %v682
        %v685 = vsel %vm473, %v682, 0
        %687 = vmatpush.msra.mxu0 0.0
        %688 = vmatpush.msra.mxu0 0.0
        %689 = vmatpush.msra.mxu0 0.0
        %690 = vmatpush.msra.mxu0 0.0
        %691 = vmatpush.msra.mxu0 0.0
        %692 = vmatpush.msra.mxu0 0.0
        %693 = vmatpush.msra.mxu0 0.0
        %694 = vmatpush.msra.mxu0 0.0
        %695 = vmatpush.msra.mxu0 0.0
        %696 = vmatpush.msra.mxu0 0.0
        %697 = vmatpush.msra.mxu0 0.0
        %698 = vmatpush.msra.mxu0 0.0
        %699 = vmatpush.msra.mxu0 %v500
        %700 = vmatpush.msra.mxu0 %v499
        %701 = vmatpush.msra.mxu0 %v498
        %702 = vmatpush.msra.mxu0 %v497
        %703 = vmatmul.f32.gmra.mxu0 %v685
        %v704 = vpop.f32.mrf.mxu0
        %v705 = vadd.f32 0.0, %v704
        %706 = vdwg.mxu0
        %707 = vrot.lane.b32.xlu0 %v495, 64
        %v708 = vpop.permute.xlu0 %707
        %710 = vxpose.xlu0.b32.start [1/16] %v708, 128
        %711 = vxpose.xlu0.b32.cont [2/16] 0.0, 128
        %712 = vxpose.xlu0.b32.cont [3/16] 0.0, 128
        %713 = vxpose.xlu0.b32.cont [4/16] 0.0, 128
        %714 = vxpose.xlu0.b32.cont [5/16] 0.0, 128
        %715 = vxpose.xlu0.b32.cont [6/16] 0.0, 128
        %716 = vxpose.xlu0.b32.cont [7/16] 0.0, 128
        %717 = vxpose.xlu0.b32.cont [8/16] 0.0, 128
        %718 = vxpose.xlu0.b32.cont [9/16] 0.0, 128
        %719 = vxpose.xlu0.b32.cont [10/16] 0.0, 128
        %720 = vxpose.xlu0.b32.cont [11/16] 0.0, 128
        %721 = vxpose.xlu0.b32.cont [12/16] 0.0, 128
        %722 = vxpose.xlu0.b32.cont [13/16] 0.0, 128
        %723 = vxpose.xlu0.b32.cont [14/16] 0.0, 128
        %724 = vxpose.xlu0.b32.cont [15/16] 0.0, 128
        %725 = vxpose.xlu0.b32.end [16/16] 0.0, 128
        %v726 = vpop.trf.xlu0
        %v727 = vpop.trf.xlu0
        %v728 = vpop.trf.xlu0
        %v729 = vpop.trf.xlu0
        %v730 = vpop.trf.xlu0
        %v731 = vpop.trf.xlu0
        %v732 = vpop.trf.xlu0
        %v733 = vpop.trf.xlu0
        %v734 = vpop.trf.xlu0
        %v735 = vpop.trf.xlu0
        %v736 = vpop.trf.xlu0
        %v737 = vpop.trf.xlu0
        %v738 = vpop.trf.xlu0
        %v739 = vpop.trf.xlu0
        %v740 = vpop.trf.xlu0
        %v741 = vpop.trf.xlu0
        %743 = vrot.lane.b32.xlu0 %v726, 8
        %v744 = vpop.permute.xlu0 %743
        %746 = vrot.lane.b32.xlu0 %v726, 16
        %v747 = vpop.permute.xlu0 %746
        %749 = vrot.lane.b32.xlu0 %v726, 24
        %v750 = vpop.permute.xlu0 %749
        %v752 = vsel %vm583, %v726, %v744
        %v753 = vsel %vm588, %v752, %v747
        %v754 = vsel %vm593, %v753, %v750
        %v755 = vmul.f32 %v754, %v501
        %vm756 = vcmask 257024
        %v757 = vsel %vm756, %v755, 0.0
        %v758 = vrot.slane %v757, 4
        %v759 = vadd.f32 %v757, %v758
        %v760 = vrot.slane %v759, 2
        %v761 = vadd.f32 %v759, %v760
        %v762 = vrot.slane %v761, 1
        %v763 = vadd.f32 %v761, %v762
        %v764 = vmul.f32 %v705, %v763
        %v766 = vperm.slane %v506, 0
        %v769 = vsel %vm473, %v764, 0
        %771 = vmatpush.msra.mxu0 0.0
        %772 = vmatpush.msra.mxu0 0.0
        %773 = vmatpush.msra.mxu0 0.0
        %774 = vmatpush.msra.mxu0 0.0
        %775 = vmatpush.msra.mxu0 0.0
        %776 = vmatpush.msra.mxu0 0.0
        %777 = vmatpush.msra.mxu0 0.0
        %778 = vmatpush.msra.mxu0 0.0
        %779 = vmatpush.msra.mxu0 0.0
        %780 = vmatpush.msra.mxu0 0.0
        %781 = vmatpush.msra.mxu0 0.0
        %782 = vmatpush.msra.mxu0 0.0
        %783 = vmatpush.msra.mxu0 %v505
        %784 = vmatpush.msra.mxu0 %v504
        %785 = vmatpush.msra.mxu0 %v503
        %786 = vmatpush.msra.mxu0 %v502
        %787 = vmatmul.f32.gmra.mxu0 %v769
        %v788 = vpop.f32.mrf.mxu0
        %v789 = vadd.f32 %v766, %v788
        %790 = vdwg.mxu0
        %791 = vst.msk [vmem:[%s456] sm:$0xff] %vm473, %v789
        %s792 = sand.u32 %s221, 1
        %s793 = scalar_lea.sflag [#allocation4], %s792
        %s794 = sand.u32 %s221, 1
        %s795 = smul.addr %s794, 8
        %s796 = scalar_lea.vmem [#allocation13], %s795
        %s797 = sand.u32 %s247, 1
        %s798 = scalar_lea.sflag [#allocation15], %s797
        %s799 = sand.u32 %s247, 1
        %s800 = smul.addr %s799, 8
        %s801 = scalar_lea.vmem [#allocation14], %s800
        // Predicated region
        $region77: #{tpu_custom_call.1} parent=51 // pred_check
          %p802 = pneg %p231
        $region78: #{tpu_custom_call.1} parent=51 // pred_check_branch
          %804 = sbr.rel (%p802) target = $region80
        $region79: #{tpu_custom_call.1} parent=51 // pred_region
          %806 = vsyncadd %s793, 0
          %s807 = smul.addr %s35, 8
          %s808 = scalar_lea.hbm %s8, %s807
          %s810 = sshll.u32 %s796, 4
          %s811 = int_to_ptr.vmem [resolvable:$true] %s810
          %s812 = sshll.u32 %s808, 4
          %s813 = int_to_ptr.hbm [resolvable:$true] %s812
          %815 = dma.vmem_to_hbm [thread:$0]  %s811, 128, %s813, %s793
        $region80: #{tpu_custom_call.1} parent=51 // pred_fallthru
          _
        // Predicated region
        $region81: #{tpu_custom_call.1} parent=51 // pred_check
          %p816 = pneg %p257
        $region82: #{tpu_custom_call.1} parent=51 // pred_check_branch
          %818 = sbr.rel (%p816) target = $region84
        $region83: #{tpu_custom_call.1} parent=51 // pred_region
          %820 = vsyncadd %s798, 0
          %s821 = smul.addr %s35, 8
          %s822 = scalar_lea.hbm %s9, %s821
          %s824 = sshll.u32 %s801, 4
          %s825 = int_to_ptr.vmem [resolvable:$true] %s824
          %s826 = sshll.u32 %s822, 4
          %s827 = int_to_ptr.hbm [resolvable:$true] %s826
          %829 = dma.vmem_to_hbm [thread:$0]  %s825, 128, %s827, %s798
        $region84: #{tpu_custom_call.1} parent=51 // pred_fallthru
          _
      $region52: #{tpu_custom_call.1} parent=5 // pred_fallthru
        _
      %p830 = scmp.le.s32.totalorder 2, %s30
      // Predicated region
      $region85: #{tpu_custom_call.1} parent=5 // pred_check
        %p831 = pneg %p830
      $region86: #{tpu_custom_call.1} parent=5 // pred_check_branch
        %833 = sbr.rel (%p831) target = $region88
      $region87: #{tpu_custom_call.1} parent=5 // pred_region
        %s834 = ssub.s32 %s30, 2
        // Predicated region
        $region89: #{tpu_custom_call.1} parent=87 // pred_check
          %p835 = pneg %p237
        $region90: #{tpu_custom_call.1} parent=87 // pred_check_branch
          %837 = sbr.rel (%p835) target = $region92
        $region91: #{tpu_custom_call.1} parent=87 // pred_region
          %s838 = sand.u32 %s222, 1
          %s839 = scalar_lea.sflag [#allocation4], %s838
          %s840 = sand.u32 %s222, 1
          %s841 = smul.addr %s840, 8
          %s842 = scalar_lea.vmem [#allocation13], %s841
          %844 = dma.done %s839, 128
        $region92: #{tpu_custom_call.1} parent=87 // pred_fallthru
          _
        // Predicated region
        $region93: #{tpu_custom_call.1} parent=87 // pred_check
          %p845 = pneg %p263
        $region94: #{tpu_custom_call.1} parent=87 // pred_check_branch
          %847 = sbr.rel (%p845) target = $region96
        $region95: #{tpu_custom_call.1} parent=87 // pred_region
          %s848 = sand.u32 %s248, 1
          %s849 = scalar_lea.sflag [#allocation15], %s848
          %s850 = sand.u32 %s248, 1
          %s851 = smul.addr %s850, 8
          %s852 = scalar_lea.vmem [#allocation14], %s851
          %854 = dma.done %s849, 128
        $region96: #{tpu_custom_call.1} parent=87 // pred_fallthru
          _
      $region88: #{tpu_custom_call.1} parent=5 // pred_fallthru
        _
    $region6: #{tpu_custom_call.1} parent=1 // loop_footer
      %s34 = sadd.s32 1, %s30
    $region7: #{tpu_custom_call.1} parent=1 // loop_footer_branch
      %29 = sbr.rel target = $region3
    $region8: #{tpu_custom_call.1} parent=1 // loop_exit
      _
    %855 = vsyncpa [#allocation3], 1
    %s856 = scalar_lea.sflag [#allocation3], 1
    %857 = vsyncpa %s856, 1
    %858 = vsyncpa [#allocation6], 1
    %s859 = scalar_lea.sflag [#allocation6], 1
    %860 = vsyncpa %s859, 1
    %861 = vsyncpa [#allocation9], 1
    %862 = vsyncpa [#allocation12], 1
    %863 = vsyncpa [#allocation4], 1
    %s864 = scalar_lea.sflag [#allocation4], 1
    %865 = vsyncpa %s864, 1
    %866 = vsyncpa [#allocation15], 1
    %s867 = scalar_lea.sflag [#allocation15], 1
    %868 = vsyncpa %s867, 1

</llo_original>
